<compile_context>
chip_gen: v7x
topology: tpu7x:2x2x1
jax: 0.10.0
libtpu: 0.0.40
codegen_flags: <defaults>
</compile_context>

<pallas_src>
import functools

import jax
import jax.numpy as jnp
from jax.experimental import pallas as pl
from jax.experimental.pallas import tpu as pltpu


def _round_up(x, m):
    return (x + m - 1) // m * m


def _choose_tile(batch, tile_b):
    """Batch tile: multiple of 128 lanes, >=2 grid steps when batch >= 256."""
    b128 = _round_up(max(batch, 1), 128)
    tb = min(_round_up(tile_b, 128), b128)
    if b128 >= 256:
        tb = min(tb, _round_up(b128 // 2, 128))   # both v7x TensorCores get work
    return max(tb, 128)


def _softplus(x):
    # torch.nn.functional.softplus (beta=1, threshold=20), forward-only form:
    # x for x > 20, else log1p(exp(x)).  exp() may overflow to inf for x > 20
    # but that branch is discarded by the select (no NaN).
    # TODO(synk): restore a jnp.minimum clamp if this kernel is ever differentiated.
    return jnp.where(x > 20.0, x, jnp.log1p(jnp.exp(x)))


def _fnn_kernel(front_ref, wfront_ref, bcat_ref, w23_ref, w4_ref, b4_ref, out_ref):
    feat = w23_ref.shape[1]

    # Fused [embedding gather (3 tables) | lin1] in one MXU pass.
    z = jnp.dot(wfront_ref[...], front_ref[...],
                preferred_element_type=jnp.float32)          # (4*feat, tb)
    bcat = bcat_ref[...]                                     # (3*feat, 1)
    w23 = w23_ref[...]                                       # (2*feat, feat)

    g1 = z[0:feat]                                           # sublane-aligned slices
    g2 = z[feat:2 * feat]
    g3 = z[2 * feat:3 * feat]
    h = z[3 * feat:4 * feat]                                 # (eps @ W1)^T

    # lin1 (ConditionalLinear) + softplus
    h = _softplus(g1 * (h + bcat[0:feat]))
    # lin2 + softplus
    h = jnp.dot(w23[0:feat], h, preferred_element_type=jnp.float32)
    h = _softplus(g2 * (h + bcat[feat:2 * feat]))
    # lin3 + softplus
    h = jnp.dot(w23[feat:2 * feat], h, preferred_element_type=jnp.float32)
    h = _softplus(g3 * (h + bcat[2 * feat:3 * feat]))
    # lin4 (feat -> 1): VPU multiply + sublane reduction; lane-dense (1, tb) store.
    out_ref[...] = jnp.sum(h * w4_ref[...], axis=0, keepdims=True) + b4_ref[...]


@functools.partial(jax.jit, static_argnames=("tile_b",))
def fnn_pallas(front_fm, w_front, b_cat, w23, w4_col, b4, *, tile_b=2048):
    K0, B = front_fm.shape          # K0 = n_steps + data_dim
    feat = w23.shape[1]

    tb = _choose_tile(B, tile_b)
    Bp = _round_up(B, tb)
    if Bp != B:
        front_fm = jnp.pad(front_fm, ((0, 0), (0, Bp - B)))  # padded cols: zeros

    col = lambda i: (0, i)   # tile along the (lane) batch axis
    rep = lambda i: (0, 0)   # replicated parameter blocks (fetched once)

    grid_spec = pltpu.PrefetchScalarGridSpec(
        num_scalar_prefetch=0,
        grid=(Bp // tb,),
        in_specs=[
            pl.BlockSpec((K0, tb), col),            # [onehot(t); eps^T]
            pl.BlockSpec((4 * feat, K0), rep),      # [[emb123^T|0],[0|W1^T]]
            pl.BlockSpec((3 * feat, 1), rep),       # [b1; b2; b3] column
            pl.BlockSpec((2 * feat, feat), rep),    # [W2^T; W3^T]
            pl.BlockSpec((feat, 1), rep),           # w4 column
            pl.BlockSpec((1, 1), rep),              # b4
        ],
        out_specs=pl.BlockSpec((1, tb), col),       # lane-dense output row
    )
    out = pl.pallas_call(
        _fnn_kernel,
        out_shape=jax.ShapeDtypeStruct((1, Bp), jnp.float32),
        grid_spec=grid_spec,
        compiler_params=pltpu.CompilerParams(
            dimension_semantics=("parallel",),
            vmem_limit_bytes=32 * 1024 * 1024),
    )(front_fm, w_front, b_cat, w23, w4_col, b4)
    return out[0, :B].reshape(B, 1)


def init_params(key, data_dim, feature_dim, n_steps):
    """Deterministic synthetic parameters matching the module's shapes.

    Linear weights are stored transposed vs. PyTorch: w* is (in, out)."""
    ks = jax.random.split(key, 12)

    def lin(kw, kb, fan_in, fan_out):
        bound = 1.0 / jnp.sqrt(fan_in)
        w = jax.random.uniform(kw, (fan_in, fan_out), jnp.float32, -bound, bound)
        b = jax.random.uniform(kb, (1, fan_out), jnp.float32, -bound, bound)
        return w, b

    w1, b1 = lin(ks[0], ks[1], data_dim, feature_dim)
    w2, b2 = lin(ks[2], ks[3], feature_dim, feature_dim)
    w3, b3 = lin(ks[4], ks[5], feature_dim, feature_dim)
    w4, b4 = lin(ks[6], ks[7], feature_dim, 1)
    # nn.Embedding(n_steps, feature_dim) with .weight.data.uniform_() -> U[0,1)
    emb1 = jax.random.uniform(ks[8], (n_steps, feature_dim), jnp.float32)
    emb2 = jax.random.uniform(ks[9], (n_steps, feature_dim), jnp.float32)
    emb3 = jax.random.uniform(ks[10], (n_steps, feature_dim), jnp.float32)
    return dict(w1=w1, b1=b1, w2=w2, b2=b2, w3=w3, b3=b3, w4=w4, b4=b4,
                emb1=emb1, emb2=emb2, emb3=emb3)


def conditional_guided_fnn(x, y_t, y_0_hat, t, params, *,
                           window_cat_x, cat_x=True, cat_y_pred=True,
                           tile_b=2048):
    """Mirrors ConditionalGuidedModelFNN.forward."""
    B = x.shape[0]
    y_t = y_t.reshape(-1, 1).astype(jnp.float32)
    y_0_hat = y_0_hat.reshape(-1, 1).astype(jnp.float32)
    if window_cat_x is not None:
        x = x[:, -window_cat_x:, :]
    x = x.reshape(B, -1).astype(jnp.float32)
    if cat_x:
        if cat_y_pred:
            eps_pred = jnp.concatenate([y_t, y_0_hat, x], axis=1)
        else:
            eps_pred = jnp.concatenate([y_t, x], axis=1)
    elif cat_y_pred:
        eps_pred = jnp.concatenate([y_t, y_0_hat], axis=1)
    else:
        eps_pred = y_t

    feat = params["w1"].shape[1]
    n_steps = params["emb1"].shape[0]
    data_dim = eps_pred.shape[1]
    K0 = n_steps + data_dim

    # Pack parameters (tiny, once per call).
    # W_front = [[emb1^T; emb2^T; emb3^T | 0], [0 | W1^T]]  (4*feat, K0)
    emb_cat_t = jnp.concatenate(
        [params["emb1"].T, params["emb2"].T, params["emb3"].T], axis=0)
    w_front = jnp.zeros((4 * feat, K0), jnp.float32)
    w_front = w_front.at[:3 * feat, :n_steps].set(emb_cat_t)
    w_front = w_front.at[3 * feat:, n_steps:].set(params["w1"].T)
    b_cat = jnp.concatenate([params["b1"], params["b2"], params["b3"]], axis=1).T
    w23 = jnp.concatenate([params["w2"].T, params["w3"].T], axis=0)
    w4_col = params["w4"]                       # (feat, 1)
    b4 = params["b4"].reshape(1, 1)

    # Feature-major front input: [one_hot(t); eps^T].  Note: out-of-range t
    # silently yields an all-zero one-hot (unlike nn.Embedding, which errors).
    t_row = t.reshape(-1).astype(jnp.int32)[None, :]                    # (1, B)
    onehot = (jnp.arange(n_steps, dtype=jnp.int32)[:, None] == t_row
              ).astype(jnp.float32)                                     # (n_steps, B)
    front_fm = jnp.concatenate([onehot, eps_pred.T], axis=0)            # (K0, B)

    return fnn_pallas(front_fm, w_front, b_cat, w23, w4_col, b4, tile_b=tile_b)


def _reference(x, y_t, y_0_hat, t, params, *, window_cat_x):
    B = x.shape[0]
    y_t = y_t.reshape(-1, 1)
    y_0_hat = y_0_hat.reshape(-1, 1)
    xw = x[:, -window_cat_x:, :].reshape(B, -1)
    eps = jnp.concatenate([y_t, y_0_hat, xw], axis=1)
    h = jax.nn.softplus(params["emb1"][t] * (eps @ params["w1"] + params["b1"]))
    h = jax.nn.softplus(params["emb2"][t] * (h @ params["w2"] + params["b2"]))
    h = jax.nn.softplus(params["emb3"][t] * (h @ params["w3"] + params["b3"]))
    return h @ params["w4"] + params["b4"]


if __name__ == "__main__":
    # Config: timesteps=10 -> n_steps=11; x_dim=4; window_cat_x=3;
    # cat_x=True, cat_y_pred=True -> data_dim = 1 + 4*3 + 1 = 14; feature_dim=32.
    B, SEQ, X_DIM, WINDOW, FEAT, N_STEPS = 8, 5, 4, 3, 32, 11
    DATA_DIM = 1 + X_DIM * WINDOW + 1

    key = jax.random.PRNGKey(0)
    kx, kyt, ky0, kt, kp = jax.random.split(key, 5)
    x = jax.random.normal(kx, (B, SEQ, X_DIM), jnp.float32)
    y_t = jax.random.normal(kyt, (B,), jnp.float32)
    y_0_hat = jax.random.normal(ky0, (B,), jnp.float32)
    t = jax.random.randint(kt, (B,), 0, N_STEPS)
    params = init_params(kp, DATA_DIM, FEAT, N_STEPS)

    out = conditional_guided_fnn(x, y_t, y_0_hat, t, params,
                                 window_cat_x=WINDOW)
    out = jax.block_until_ready(out)
    ref = _reference(x, y_t, y_0_hat, t, params, window_cat_x=WINDOW)
    assert out.shape == (B, 1)
    assert jnp.allclose(out, ref, atol=1e-5, rtol=1e-5)

    # Second config exercises batch padding and a multi-step (2-tile) grid.
    B2 = 200
    k2 = jax.random.split(key, 4)
    x2 = jax.random.normal(k2[0], (B2, SEQ, X_DIM), jnp.float32)
    y_t2 = jax.random.normal(k2[1], (B2,), jnp.float32)
    y_0_hat2 = jax.random.normal(k2[2], (B2,), jnp.float32)
    t2 = jax.random.randint(k2[3], (B2,), 0, N_STEPS)
    out2 = conditional_guided_fnn(x2, y_t2, y_0_hat2, t2, params,
                                  window_cat_x=WINDOW)
    out2 = jax.block_until_ready(out2)
    ref2 = _reference(x2, y_t2, y_0_hat2, t2, params, window_cat_x=WINDOW)
    assert out2.shape == (B2, 1)
    assert jnp.allclose(out2, ref2, atol=1e-5, rtol=1e-5)

    print("KERNEL_OK")
</pallas_src>

<mosaic_0001>
module attributes {stable_mosaic.version = 11 : i64} {
  func.func @_fnn_kernel(%arg0: i32, %arg1: memref<25x128xf32, #tpu.memory_space<vmem>>, %arg2: memref<128x25xf32, #tpu.memory_space<vmem>>, %arg3: memref<96x1xf32, #tpu.memory_space<vmem>>, %arg4: memref<64x32xf32, #tpu.memory_space<vmem>>, %arg5: memref<32x1xf32, #tpu.memory_space<vmem>>, %arg6: memref<1x1xf32, #tpu.memory_space<vmem>>, %arg7: memref<1x128xf32, #tpu.memory_space<vmem>>) attributes {dimension_semantics = [#tpu.dimension_semantics<parallel>], iteration_bounds = array<i64: 1>, scalar_prefetch = 0 : i64, scratch_operands = 0 : i64, tpu.core_type = #tpu.core_type<tc>, window_params = [{transform_indices = @transform_0, window_bounds = array<i64: 25, 128>}, {pipeline_mode = #tpu.pipeline_mode<synchronous>, transform_indices = @transform_1, window_bounds = array<i64: 128, 25>}, {pipeline_mode = #tpu.pipeline_mode<synchronous>, transform_indices = @transform_2, window_bounds = array<i64: 96, 1>}, {pipeline_mode = #tpu.pipeline_mode<synchronous>, transform_indices = @transform_3, window_bounds = array<i64: 64, 32>}, {pipeline_mode = #tpu.pipeline_mode<synchronous>, transform_indices = @transform_4, window_bounds = array<i64: 32, 1>}, {pipeline_mode = #tpu.pipeline_mode<synchronous>, transform_indices = @transform_5, window_bounds = array<i64: 1, 1>}, {transform_indices = @transform_6, window_bounds = array<i64: 1, 128>}]} {
    %c0 = arith.constant 0 : index
    %c0_0 = arith.constant 0 : index
    %0 = vector.load %arg2[%c0, %c0_0] : memref<128x25xf32, #tpu.memory_space<vmem>>, vector<128x25xf32>
    %c0_1 = arith.constant 0 : index
    %c0_2 = arith.constant 0 : index
    %1 = vector.load %arg1[%c0_1, %c0_2] : memref<25x128xf32, #tpu.memory_space<vmem>>, vector<25x128xf32>
    %cst = arith.constant dense<0.000000e+00> : vector<128x128xf32>
    %2 = tpu.matmul %0, %1, %cst {dimension_numbers = #tpu.dot_dimension_numbers<[1], [0], [0], [1], [0, 0, 1, 1], [], []>} : vector<128x25xf32>, vector<25x128xf32>, vector<128x128xf32> -> vector<128x128xf32>
    %c0_3 = arith.constant 0 : index
    %c0_4 = arith.constant 0 : index
    %3 = vector.load %arg3[%c0_3, %c0_4] : memref<96x1xf32, #tpu.memory_space<vmem>>, vector<96x1xf32>
    %c0_5 = arith.constant 0 : index
    %c0_6 = arith.constant 0 : index
    %4 = vector.load %arg4[%c0_5, %c0_6] : memref<64x32xf32, #tpu.memory_space<vmem>>, vector<64x32xf32>
    %5 = vector.extract_strided_slice %2 {offsets = [0, 0], sizes = [32, 128], strides = [1, 1]} : vector<128x128xf32> to vector<32x128xf32>
    %6 = vector.extract_strided_slice %2 {offsets = [32, 0], sizes = [32, 128], strides = [1, 1]} : vector<128x128xf32> to vector<32x128xf32>
    %7 = vector.extract_strided_slice %2 {offsets = [64, 0], sizes = [32, 128], strides = [1, 1]} : vector<128x128xf32> to vector<32x128xf32>
    %8 = vector.extract_strided_slice %2 {offsets = [96, 0], sizes = [32, 128], strides = [1, 1]} : vector<128x128xf32> to vector<32x128xf32>
    %9 = vector.extract_strided_slice %3 {offsets = [0, 0], sizes = [32, 1], strides = [1, 1]} : vector<96x1xf32> to vector<32x1xf32>
    %10 = vector.broadcast %9 : vector<32x1xf32> to vector<32x128xf32>
    %11 = arith.addf %8, %10 : vector<32x128xf32>
    %12 = arith.mulf %5, %11 : vector<32x128xf32>
    %cst_7 = arith.constant 2.000000e+01 : f32
    %13 = vector.broadcast %cst_7 : f32 to vector<32x128xf32>
    %14 = arith.cmpf ogt, %12, %13 : vector<32x128xf32>
    %15 = math.exp %12 : vector<32x128xf32>
    %16 = math.log1p %15 : vector<32x128xf32>
    %17 = arith.select %14, %12, %16 : vector<32x128xi1>, vector<32x128xf32>
    %18 = vector.extract_strided_slice %4 {offsets = [0, 0], sizes = [32, 32], strides = [1, 1]} : vector<64x32xf32> to vector<32x32xf32>
    %cst_8 = arith.constant dense<0.000000e+00> : vector<32x128xf32>
    %19 = tpu.matmul %18, %17, %cst_8 {dimension_numbers = #tpu.dot_dimension_numbers<[1], [0], [0], [1], [0, 0, 1, 1], [], []>} : vector<32x32xf32>, vector<32x128xf32>, vector<32x128xf32> -> vector<32x128xf32>
    %20 = vector.extract_strided_slice %3 {offsets = [32, 0], sizes = [32, 1], strides = [1, 1]} : vector<96x1xf32> to vector<32x1xf32>
    %21 = vector.broadcast %20 : vector<32x1xf32> to vector<32x128xf32>
    %22 = arith.addf %19, %21 : vector<32x128xf32>
    %23 = arith.mulf %6, %22 : vector<32x128xf32>
    %cst_9 = arith.constant 2.000000e+01 : f32
    %24 = vector.broadcast %cst_9 : f32 to vector<32x128xf32>
    %25 = arith.cmpf ogt, %23, %24 : vector<32x128xf32>
    %26 = math.exp %23 : vector<32x128xf32>
    %27 = math.log1p %26 : vector<32x128xf32>
    %28 = arith.select %25, %23, %27 : vector<32x128xi1>, vector<32x128xf32>
    %29 = vector.extract_strided_slice %4 {offsets = [32, 0], sizes = [32, 32], strides = [1, 1]} : vector<64x32xf32> to vector<32x32xf32>
    %cst_10 = arith.constant dense<0.000000e+00> : vector<32x128xf32>
    %30 = tpu.matmul %29, %28, %cst_10 {dimension_numbers = #tpu.dot_dimension_numbers<[1], [0], [0], [1], [0, 0, 1, 1], [], []>} : vector<32x32xf32>, vector<32x128xf32>, vector<32x128xf32> -> vector<32x128xf32>
    %31 = vector.extract_strided_slice %3 {offsets = [64, 0], sizes = [32, 1], strides = [1, 1]} : vector<96x1xf32> to vector<32x1xf32>
    %32 = vector.broadcast %31 : vector<32x1xf32> to vector<32x128xf32>
    %33 = arith.addf %30, %32 : vector<32x128xf32>
    %34 = arith.mulf %7, %33 : vector<32x128xf32>
    %cst_11 = arith.constant 2.000000e+01 : f32
    %35 = vector.broadcast %cst_11 : f32 to vector<32x128xf32>
    %36 = arith.cmpf ogt, %34, %35 : vector<32x128xf32>
    %37 = math.exp %34 : vector<32x128xf32>
    %38 = math.log1p %37 : vector<32x128xf32>
    %39 = arith.select %36, %34, %38 : vector<32x128xi1>, vector<32x128xf32>
    %c0_12 = arith.constant 0 : index
    %c0_13 = arith.constant 0 : index
    %40 = vector.load %arg5[%c0_12, %c0_13] : memref<32x1xf32, #tpu.memory_space<vmem>>, vector<32x1xf32>
    %41 = vector.broadcast %40 : vector<32x1xf32> to vector<32x128xf32>
    %42 = arith.mulf %39, %41 : vector<32x128xf32>
    %cst_14 = arith.constant dense<0.000000e+00> : vector<128xf32>
    %43 = vector.multi_reduction <add>, %42, %cst_14 [0] : vector<32x128xf32> to vector<128xf32>
    %44 = vector.shape_cast %43 : vector<128xf32> to vector<1x128xf32>
    %c0_15 = arith.constant 0 : index
    %c0_16 = arith.constant 0 : index
    %45 = vector.load %arg6[%c0_15, %c0_16] : memref<1x1xf32, #tpu.memory_space<vmem>>, vector<1x1xf32>
    %46 = vector.broadcast %45 : vector<1x1xf32> to vector<1x128xf32>
    %47 = arith.addf %44, %46 : vector<1x128xf32>
    %c0_17 = arith.constant 0 : index
    %c0_18 = arith.constant 0 : index
    %48 = vector.load %arg7[%c0_17, %c0_18] : memref<1x128xf32, #tpu.memory_space<vmem>>, vector<1x128xf32>
    tpu.vector_store %arg7[%c0_17, %c0_18], %47 {strides = array<i32>} : memref<1x128xf32, #tpu.memory_space<vmem>>, vector<1x128xf32>,
    return
  }
  func.func @transform_0(%arg0: i32) -> (i32, i32) {
    %c0_i32 = arith.constant 0 : i32
    %c0_i32_0 = arith.constant 0 : i32
    return %c0_i32, %arg0 : i32, i32
  }
  func.func @transform_1(%arg0: i32) -> (i32, i32) {
    %c0_i32 = arith.constant 0 : i32
    %c0_i32_0 = arith.constant 0 : i32
    %c0_i32_1 = arith.constant 0 : i32
    return %c0_i32, %c0_i32_0 : i32, i32
  }
  func.func @transform_2(%arg0: i32) -> (i32, i32) {
    %c0_i32 = arith.constant 0 : i32
    %c0_i32_0 = arith.constant 0 : i32
    %c0_i32_1 = arith.constant 0 : i32
    return %c0_i32, %c0_i32_0 : i32, i32
  }
  func.func @transform_3(%arg0: i32) -> (i32, i32) {
    %c0_i32 = arith.constant 0 : i32
    %c0_i32_0 = arith.constant 0 : i32
    %c0_i32_1 = arith.constant 0 : i32
    return %c0_i32, %c0_i32_0 : i32, i32
  }
  func.func @transform_4(%arg0: i32) -> (i32, i32) {
    %c0_i32 = arith.constant 0 : i32
    %c0_i32_0 = arith.constant 0 : i32
    %c0_i32_1 = arith.constant 0 : i32
    return %c0_i32, %c0_i32_0 : i32, i32
  }
  func.func @transform_5(%arg0: i32) -> (i32, i32) {
    %c0_i32 = arith.constant 0 : i32
    %c0_i32_0 = arith.constant 0 : i32
    %c0_i32_1 = arith.constant 0 : i32
    return %c0_i32, %c0_i32_0 : i32, i32
  }
  func.func @transform_6(%arg0: i32) -> (i32, i32) {
    %c0_i32 = arith.constant 0 : i32
    %c0_i32_0 = arith.constant 0 : i32
    return %c0_i32, %arg0 : i32, i32
  }
}

</mosaic_0001>

<llo_original>
// kernel: fnn_pallas.1
$region0: #{fnn_pallas.1}
  #allocation0 [shape = 'u32[]', space=smem, size = 0x4, offset = 0x4, fixed_abs, tag = 'smem constant byte address 0x4 - core index']
  #allocation1 [shape = 'u32[144,128]{1,0:T(1,128)}', space=vmem, size = 0x12000, scoped, tag = 'internal scratch']
  #allocation2 [shape = 'f32[1,1]{1,0:T(1,128)S(1)}', space=vmem, size = 0x200, scoped, tag = 'scoped memory for fnn_pallas.1']
  %s0 = inlined_call_operand.vmem [shape: f32[25,128], index: 0, kind: input, shape index: {}]
  %s1 = inlined_call_operand.vmem [shape: f32[128,25], index: 1, kind: input, shape index: {}]
  %s2 = inlined_call_operand.vmem [shape: f32[96,1], index: 2, kind: input, shape index: {}]
  %s3 = inlined_call_operand.vmem [shape: f32[64,32], index: 3, kind: input, shape index: {}]
  %s4 = inlined_call_operand.vmem [shape: f32[32,1], index: 4, kind: input, shape index: {}]
  %s5 = inlined_call_operand.<no memory space> [shape: f32[1,1], index: 5, kind: input, shape index: {}]
  %s6 = inlined_call_operand.vmem [shape: f32[1,128], index: 6, kind: output, shape index: {}]
  %s7 = sld [smem:[#allocation0]]
  $region34: #{fnn_pallas.1} parent=0
    _
  %s9 = ssub.s32 1, %s7
  %s10 = scalar_select 0, %s9, %s7
  %v11 = vstv %s5
  %12 = vst [vmem:[#allocation2] sm:$0x1] %v11
  // Predicated region
  $region2: #{fnn_pallas.1} parent=0 // pred_check
    _
  $region3: #{fnn_pallas.1} parent=0 // pred_check_branch
    %14 = sbr.rel (0) target = $region5
  $region4: #{fnn_pallas.1} parent=0 // pred_region
    _
  $region5: #{fnn_pallas.1} parent=0 // pred_fallthru
    _
  // Predicated region
  $region6: #{fnn_pallas.1} parent=0 // pred_check
    _
  $region7: #{fnn_pallas.1} parent=0 // pred_check_branch
    %16 = sbr.rel (0) target = $region9
  $region8: #{fnn_pallas.1} parent=0 // pred_region
    _
  $region9: #{fnn_pallas.1} parent=0 // pred_fallthru
    _
  // Predicated region
  $region10: #{fnn_pallas.1} parent=0 // pred_check
    _
  $region11: #{fnn_pallas.1} parent=0 // pred_check_branch
    %18 = sbr.rel (0) target = $region13
  $region12: #{fnn_pallas.1} parent=0 // pred_region
    _
  $region13: #{fnn_pallas.1} parent=0 // pred_fallthru
    _
  // Predicated region
  $region14: #{fnn_pallas.1} parent=0 // pred_check
    _
  $region15: #{fnn_pallas.1} parent=0 // pred_check_branch
    %20 = sbr.rel (0) target = $region17
  $region16: #{fnn_pallas.1} parent=0 // pred_region
    _
  $region17: #{fnn_pallas.1} parent=0 // pred_fallthru
    _
  // Predicated region
  $region18: #{fnn_pallas.1} parent=0 // pred_check
    _
  $region19: #{fnn_pallas.1} parent=0 // pred_check_branch
    %22 = sbr.rel (0) target = $region21
  $region20: #{fnn_pallas.1} parent=0 // pred_region
    _
  $region21: #{fnn_pallas.1} parent=0 // pred_fallthru
    _
  // Predicated region
  $region22: #{fnn_pallas.1} parent=0 // pred_check
    _
  $region23: #{fnn_pallas.1} parent=0 // pred_check_branch
    %24 = sbr.rel (0) target = $region25
  $region24: #{fnn_pallas.1} parent=0 // pred_region
    _
  $region25: #{fnn_pallas.1} parent=0 // pred_fallthru
    _
  %v25 = vld [vmem:[%s1] sm:$0xff]
  %v26 = vld [vmem:[%s1 + $0x8] sm:$0xff]
  %v27 = vld [vmem:[%s1 + $0x10] sm:$0xff]
  %v28 = vld [vmem:[%s1 + $0x18] sm:$0xff]
  %v29 = vld [vmem:[%s1 + $0x20] sm:$0xff]
  %v30 = vld [vmem:[%s1 + $0x28] sm:$0xff]
  %v31 = vld [vmem:[%s1 + $0x30] sm:$0xff]
  %v32 = vld [vmem:[%s1 + $0x38] sm:$0xff]
  %v33 = vld [vmem:[%s1 + $0x40] sm:$0xff]
  %v34 = vld [vmem:[%s1 + $0x48] sm:$0xff]
  %v35 = vld [vmem:[%s1 + $0x50] sm:$0xff]
  %v36 = vld [vmem:[%s1 + $0x58] sm:$0xff]
  %v37 = vld [vmem:[%s1 + $0x60] sm:$0xff]
  %v38 = vld [vmem:[%s1 + $0x68] sm:$0xff]
  %v39 = vld [vmem:[%s1 + $0x70] sm:$0xff]
  %v40 = vld [vmem:[%s1 + $0x78] sm:$0xff]
  %v41 = vld [vmem:[%s0] sm:$0xff]
  %v42 = vld [vmem:[%s0 + $0x8] sm:$0xff]
  %v43 = vld [vmem:[%s0 + $0x10] sm:$0xff]
  %v44 = vld [vmem:[%s0 + $0x18] sm:$0x1]
  %vm45 = vcmask 203776
  %v47 = vsel %vm45, %v25, 0
  %v50 = vsel %vm45, %v26, 0
  %v53 = vsel %vm45, %v27, 0
  %v56 = vsel %vm45, %v28, 0
  %v59 = vsel %vm45, %v29, 0
  %v62 = vsel %vm45, %v30, 0
  %v65 = vsel %vm45, %v31, 0
  %v68 = vsel %vm45, %v32, 0
  %v71 = vsel %vm45, %v33, 0
  %v74 = vsel %vm45, %v34, 0
  %v77 = vsel %vm45, %v35, 0
  %v80 = vsel %vm45, %v36, 0
  %v83 = vsel %vm45, %v37, 0
  %v86 = vsel %vm45, %v38, 0
  %v89 = vsel %vm45, %v39, 0
  %v92 = vsel %vm45, %v40, 0
  %vm94 = vcmask 1040384
  %v96 = vsel %vm94, %v44, 0
  %98 = vmatprep.subr.mxu0 0.0
  %99 = vmatpush1.msra.mxu0 %v41
  %100 = vmatprep.subr.mxu0 0.0
  %101 = vmatpush1.msra.mxu0 %v42
  %102 = vmatprep.subr.mxu0 0.0
  %103 = vmatpush1.msra.mxu0 %v43
  %104 = vmatprep.subr.mxu0 0.0
  %105 = vmatpush1.msra.mxu0 %v96
  %106 = vmatprep.subr.mxu0 0.0
  %107 = vmatpush1.msra.mxu0 0.0
  %108 = vmatprep.subr.mxu0 0.0
  %109 = vmatpush1.msra.mxu0 0.0
  %110 = vmatprep.subr.mxu0 0.0
  %111 = vmatpush1.msra.mxu0 0.0
  %112 = vmatprep.subr.mxu0 0.0
  %113 = vmatpush1.msra.mxu0 0.0
  %114 = vmatprep.subr.mxu0 0.0
  %115 = vmatpush1.msra.mxu0 0.0
  %116 = vmatprep.subr.mxu0 0.0
  %117 = vmatpush1.msra.mxu0 0.0
  %118 = vmatprep.subr.mxu0 0.0
  %119 = vmatpush1.msra.mxu0 0.0
  %120 = vmatprep.subr.mxu0 0.0
  %121 = vmatpush1.msra.mxu0 0.0
  %122 = vmatprep.subr.mxu0 0.0
  %123 = vmatpush1.msra.mxu0 0.0
  %124 = vmatprep.subr.mxu0 0.0
  %125 = vmatpush1.msra.mxu0 0.0
  %126 = vmatprep.subr.mxu0 0.0
  %127 = vmatpush1.msra.mxu0 0.0
  %128 = vmatprep.subr.mxu0 0.0
  %129 = vmatpush1.msra.mxu0 0.0
  %130 = vmatprep.subr.mxu0 0.0
  %131 = vmatpush1.msra.mxu0 0.0
  %132 = vmatprep.subr.mxu0 0.0
  %133 = vmatpush1.msra.mxu0 0.0
  %134 = vmatprep.subr.mxu0 0.0
  %135 = vmatpush1.msra.mxu0 0.0
  %136 = vmatprep.subr.mxu0 0.0
  %137 = vmatpush1.msra.mxu0 0.0
  %138 = vmatprep.subr.mxu0 0.0
  %139 = vmatpush1.msra.mxu0 0.0
  %140 = vmatprep.subr.mxu0 0.0
  %141 = vmatpush1.msra.mxu0 0.0
  %142 = vmatprep.subr.mxu0 0.0
  %143 = vmatpush1.msra.mxu0 0.0
  %144 = vmatprep.subr.mxu0 0.0
  %145 = vmatpush1.msra.mxu0 0.0
  %146 = vmatprep.subr.mxu0 0.0
  %147 = vmatpush1.msra.mxu0 0.0
  %148 = vmatprep.subr.mxu0 0.0
  %149 = vmatpush1.msra.mxu0 0.0
  %150 = vmatprep.subr.mxu0 0.0
  %151 = vmatpush1.msra.mxu0 0.0
  %152 = vmatprep.subr.mxu0 0.0
  %153 = vmatpush1.msra.mxu0 0.0
  %154 = vmatprep.subr.mxu0 0.0
  %155 = vmatpush1.msra.mxu0 0.0
  %156 = vmatprep.subr.mxu0 0.0
  %157 = vmatpush1.msra.mxu0 0.0
  %158 = vmatprep.subr.mxu0 0.0
  %159 = vmatpush1.msra.mxu0 0.0
  %160 = vmatprep.subr.mxu0 0.0
  %161 = vmatpush1.msra.mxu0 0.0
  %162 = vmatprep.mubr.f32.mxu0 0.0
  %163 = vmatmul.mubr.f32.gmra.mrb[0].mxu0 %v47
  %v164 = vpop.f32.mrb[0].mxu0
  %v165 = vadd.f32 0.0, %v164
  %v166 = vpop.f32.mrb[0].mxu0
  %167 = vmatprep.mubr.f32.mxu0 0.0
  %168 = vmatmul.mubr.f32.gmra.mrb[0].mxu0 %v50
  %v169 = vpop.f32.mrb[0].mxu0
  %v170 = vadd.f32 0.0, %v169
  %v171 = vpop.f32.mrb[0].mxu0
  %172 = vmatprep.mubr.f32.mxu0 0.0
  %173 = vmatmul.mubr.f32.gmra.mrb[0].mxu0 %v53
  %v174 = vpop.f32.mrb[0].mxu0
  %v175 = vadd.f32 0.0, %v174
  %v176 = vpop.f32.mrb[0].mxu0
  %177 = vmatprep.mubr.f32.mxu0 0.0
  %178 = vmatmul.mubr.f32.gmra.mrb[0].mxu0 %v56
  %v179 = vpop.f32.mrb[0].mxu0
  %v180 = vadd.f32 0.0, %v179
  %v181 = vpop.f32.mrb[0].mxu0
  %182 = vmatprep.mubr.f32.mxu0 0.0
  %183 = vmatmul.mubr.f32.gmra.mrb[0].mxu0 %v59
  %v184 = vpop.f32.mrb[0].mxu0
  %v185 = vadd.f32 0.0, %v184
  %v186 = vpop.f32.mrb[0].mxu0
  %187 = vmatprep.mubr.f32.mxu0 0.0
  %188 = vmatmul.mubr.f32.gmra.mrb[0].mxu0 %v62
  %v189 = vpop.f32.mrb[0].mxu0
  %v190 = vadd.f32 0.0, %v189
  %v191 = vpop.f32.mrb[0].mxu0
  %192 = vmatprep.mubr.f32.mxu0 0.0
  %193 = vmatmul.mubr.f32.gmra.mrb[0].mxu0 %v65
  %v194 = vpop.f32.mrb[0].mxu0
  %v195 = vadd.f32 0.0, %v194
  %v196 = vpop.f32.mrb[0].mxu0
  %197 = vmatprep.mubr.f32.mxu0 0.0
  %198 = vmatmul.mubr.f32.gmra.mrb[0].mxu0 %v68
  %v199 = vpop.f32.mrb[0].mxu0
  %v200 = vadd.f32 0.0, %v199
  %v201 = vpop.f32.mrb[0].mxu0
  %202 = vmatprep.mubr.f32.mxu0 0.0
  %203 = vmatmul.mubr.f32.gmra.mrb[0].mxu0 %v71
  %v204 = vpop.f32.mrb[0].mxu0
  %v205 = vadd.f32 0.0, %v204
  %v206 = vpop.f32.mrb[0].mxu0
  %207 = vmatprep.mubr.f32.mxu0 0.0
  %208 = vmatmul.mubr.f32.gmra.mrb[0].mxu0 %v74
  %v209 = vpop.f32.mrb[0].mxu0
  %v210 = vadd.f32 0.0, %v209
  %v211 = vpop.f32.mrb[0].mxu0
  %212 = vmatprep.mubr.f32.mxu0 0.0
  %213 = vmatmul.mubr.f32.gmra.mrb[0].mxu0 %v77
  %v214 = vpop.f32.mrb[0].mxu0
  %v215 = vadd.f32 0.0, %v214
  %v216 = vpop.f32.mrb[0].mxu0
  %217 = vmatprep.mubr.f32.mxu0 0.0
  %218 = vmatmul.mubr.f32.gmra.mrb[0].mxu0 %v80
  %v219 = vpop.f32.mrb[0].mxu0
  %v220 = vadd.f32 0.0, %v219
  %v221 = vpop.f32.mrb[0].mxu0
  %222 = vmatprep.mubr.f32.mxu0 0.0
  %223 = vmatmul.mubr.f32.gmra.mrb[0].mxu0 %v83
  %v224 = vpop.f32.mrb[0].mxu0
  %v225 = vadd.f32 0.0, %v224
  %v226 = vpop.f32.mrb[0].mxu0
  %227 = vmatprep.mubr.f32.mxu0 0.0
  %228 = vmatmul.mubr.f32.gmra.mrb[0].mxu0 %v86
  %v229 = vpop.f32.mrb[0].mxu0
  %v230 = vadd.f32 0.0, %v229
  %v231 = vpop.f32.mrb[0].mxu0
  %232 = vmatprep.mubr.f32.mxu0 0.0
  %233 = vmatmul.mubr.f32.gmra.mrb[0].mxu0 %v89
  %v234 = vpop.f32.mrb[0].mxu0
  %v235 = vadd.f32 0.0, %v234
  %v236 = vpop.f32.mrb[0].mxu0
  %237 = vmatprep.mubr.f32.mxu0 0.0
  %238 = vmatmul.mubr.f32.gmra.mrb[0].mxu0 %v92
  %v239 = vpop.f32.mrb[0].mxu0
  %v240 = vadd.f32 0.0, %v239
  %v241 = vpop.f32.mrb[0].mxu0
  %242 = vdwg.mxu0
  %v243 = vld [vmem:[%s2] sm:$0xff]
  %v244 = vld [vmem:[%s2 + $0x8] sm:$0xff]
  %v245 = vld [vmem:[%s2 + $0x10] sm:$0xff]
  %v246 = vld [vmem:[%s2 + $0x18] sm:$0xff]
  %v247 = vld [vmem:[%s2 + $0x20] sm:$0xff]
  %v248 = vld [vmem:[%s2 + $0x28] sm:$0xff]
  %v249 = vld [vmem:[%s2 + $0x30] sm:$0xff]
  %v250 = vld [vmem:[%s2 + $0x38] sm:$0xff]
  %v251 = vld [vmem:[%s2 + $0x40] sm:$0xff]
  %v252 = vld [vmem:[%s2 + $0x48] sm:$0xff]
  %v253 = vld [vmem:[%s2 + $0x50] sm:$0xff]
  %v254 = vld [vmem:[%s2 + $0x58] sm:$0xff]
  %v255 = vld [vmem:[%s3] sm:$0xff]
  %v256 = vld [vmem:[%s3 + $0x8] sm:$0xff]
  %v257 = vld [vmem:[%s3 + $0x10] sm:$0xff]
  %v258 = vld [vmem:[%s3 + $0x18] sm:$0xff]
  %v259 = vld [vmem:[%s3 + $0x20] sm:$0xff]
  %v260 = vld [vmem:[%s3 + $0x28] sm:$0xff]
  %v261 = vld [vmem:[%s3 + $0x30] sm:$0xff]
  %v262 = vld [vmem:[%s3 + $0x38] sm:$0xff]
  %264 = vset.pattern.permute.xlu0 0
  %265 = vperm.xlu0 %264, %v243
  %v266 = vpop.permute.xlu0 %265
  %269 = vset.pattern.permute.xlu0 0
  %270 = vperm.xlu0 %269, %v244
  %v271 = vpop.permute.xlu0 %270
  %274 = vset.pattern.permute.xlu0 0
  %275 = vperm.xlu0 %274, %v245
  %v276 = vpop.permute.xlu0 %275
  %279 = vset.pattern.permute.xlu0 0
  %280 = vperm.xlu0 %279, %v246
  %v281 = vpop.permute.xlu0 %280
  %v283 = vadd.f32 %v225, %v266
  %v284 = vadd.f32 %v230, %v271
  %v285 = vadd.f32 %v235, %v276
  %v286 = vadd.f32 %v240, %v281
  %v287 = vmul.f32 %v165, %v283
  %v288 = vmul.f32 %v170, %v284
  %v289 = vmul.f32 %v175, %v285
  %v290 = vmul.f32 %v180, %v286
  %vm291 = vcmp.gt.f32.partialorder %v287, 20.0
  %vm292 = vcmp.gt.f32.partialorder %v288, 20.0
  %vm293 = vcmp.gt.f32.partialorder %v289, 20.0
  %vm294 = vcmp.gt.f32.partialorder %v290, 20.0
  %v295 = vmul.f32 %v287, 1.442695
  %v296 = vpow.pop %v295
  %v297 = vmul.f32 %v288, 1.442695
  %v298 = vpow.pop %v297
  %v299 = vmul.f32 %v289, 1.442695
  %v300 = vpow.pop %v299
  %v301 = vmul.f32 %v290, 1.442695
  %v302 = vpow.pop %v301
  %v303 = vadd.f32 %v296, 1.0
  %v304 = vlog2.pop %v303
  %v305 = vmul.f32 %v304, 0.6931472
  %v306 = vmul.f32 -0.5, %v296
  %v307 = vadd.f32 %v306, 1.0
  %v308 = vmul.f32 %v307, %v296
  %v309 = vand.u32 2147483647, %v296
  %vm310 = vcmp.lt.f32.partialorder %v309, 0.0004427343
  %v311 = vsel %vm310, %v308, %v305
  %v312 = vadd.f32 %v298, 1.0
  %v313 = vlog2.pop %v312
  %v314 = vmul.f32 %v313, 0.6931472
  %v315 = vmul.f32 -0.5, %v298
  %v316 = vadd.f32 %v315, 1.0
  %v317 = vmul.f32 %v316, %v298
  %v318 = vand.u32 2147483647, %v298
  %vm319 = vcmp.lt.f32.partialorder %v318, 0.0004427343
  %v320 = vsel %vm319, %v317, %v314
  %v321 = vadd.f32 %v300, 1.0
  %v322 = vlog2.pop %v321
  %v323 = vmul.f32 %v322, 0.6931472
  %v324 = vmul.f32 -0.5, %v300
  %v325 = vadd.f32 %v324, 1.0
  %v326 = vmul.f32 %v325, %v300
  %v327 = vand.u32 2147483647, %v300
  %vm328 = vcmp.lt.f32.partialorder %v327, 0.0004427343
  %v329 = vsel %vm328, %v326, %v323
  %v330 = vadd.f32 %v302, 1.0
  %v331 = vlog2.pop %v330
  %v332 = vmul.f32 %v331, 0.6931472
  %v333 = vmul.f32 -0.5, %v302
  %v334 = vadd.f32 %v333, 1.0
  %v335 = vmul.f32 %v334, %v302
  %v336 = vand.u32 2147483647, %v302
  %vm337 = vcmp.lt.f32.partialorder %v336, 0.0004427343
  %v338 = vsel %vm337, %v335, %v332
  %v339 = vsel %vm291, %v287, %v311
  %v340 = vsel %vm292, %v288, %v320
  %v341 = vsel %vm293, %v289, %v329
  %v342 = vsel %vm294, %v290, %v338
  %344 = vset.pattern.permute.xlu0 0
  %345 = vperm.xlu0 %344, %v247
  %v346 = vpop.permute.xlu0 %345
  %349 = vset.pattern.permute.xlu0 0
  %350 = vperm.xlu0 %349, %v248
  %v351 = vpop.permute.xlu0 %350
  %354 = vset.pattern.permute.xlu0 0
  %355 = vperm.xlu0 %354, %v249
  %v356 = vpop.permute.xlu0 %355
  %359 = vset.pattern.permute.xlu0 0
  %360 = vperm.xlu0 %359, %v250
  %v361 = vpop.permute.xlu0 %360
  %vm363 = vcmask 261120
  %v365 = vsel %vm363, %v255, 0
  %v368 = vsel %vm363, %v256, 0
  %v371 = vsel %vm363, %v257, 0
  %v374 = vsel %vm363, %v258, 0
  %376 = vmatprep.subr.mxu0 0.0
  %377 = vmatpush1.msra.mxu0 %v339
  %378 = vmatprep.subr.mxu0 0.0
  %379 = vmatpush1.msra.mxu0 %v340
  %380 = vmatprep.subr.mxu0 0.0
  %381 = vmatpush1.msra.mxu0 %v341
  %382 = vmatprep.subr.mxu0 0.0
  %383 = vmatpush1.msra.mxu0 %v342
  %384 = vmatprep.subr.mxu0 0.0
  %385 = vmatpush1.msra.mxu0 0.0
  %386 = vmatprep.subr.mxu0 0.0
  %387 = vmatpush1.msra.mxu0 0.0
  %388 = vmatprep.subr.mxu0 0.0
  %389 = vmatpush1.msra.mxu0 0.0
  %390 = vmatprep.subr.mxu0 0.0
  %391 = vmatpush1.msra.mxu0 0.0
  %392 = vmatprep.subr.mxu0 0.0
  %393 = vmatpush1.msra.mxu0 0.0
  %394 = vmatprep.subr.mxu0 0.0
  %395 = vmatpush1.msra.mxu0 0.0
  %396 = vmatprep.subr.mxu0 0.0
  %397 = vmatpush1.msra.mxu0 0.0
  %398 = vmatprep.subr.mxu0 0.0
  %399 = vmatpush1.msra.mxu0 0.0
  %400 = vmatprep.subr.mxu0 0.0
  %401 = vmatpush1.msra.mxu0 0.0
  %402 = vmatprep.subr.mxu0 0.0
  %403 = vmatpush1.msra.mxu0 0.0
  %404 = vmatprep.subr.mxu0 0.0
  %405 = vmatpush1.msra.mxu0 0.0
  %406 = vmatprep.subr.mxu0 0.0
  %407 = vmatpush1.msra.mxu0 0.0
  %408 = vmatprep.subr.mxu0 0.0
  %409 = vmatpush1.msra.mxu0 0.0
  %410 = vmatprep.subr.mxu0 0.0
  %411 = vmatpush1.msra.mxu0 0.0
  %412 = vmatprep.subr.mxu0 0.0
  %413 = vmatpush1.msra.mxu0 0.0
  %414 = vmatprep.subr.mxu0 0.0
  %415 = vmatpush1.msra.mxu0 0.0
  %416 = vmatprep.subr.mxu0 0.0
  %417 = vmatpush1.msra.mxu0 0.0
  %418 = vmatprep.subr.mxu0 0.0
  %419 = vmatpush1.msra.mxu0 0.0
  %420 = vmatprep.subr.mxu0 0.0
  %421 = vmatpush1.msra.mxu0 0.0
  %422 = vmatprep.subr.mxu0 0.0
  %423 = vmatpush1.msra.mxu0 0.0
  %424 = vmatprep.subr.mxu0 0.0
  %425 = vmatpush1.msra.mxu0 0.0
  %426 = vmatprep.subr.mxu0 0.0
  %427 = vmatpush1.msra.mxu0 0.0
  %428 = vmatprep.subr.mxu0 0.0
  %429 = vmatpush1.msra.mxu0 0.0
  %430 = vmatprep.subr.mxu0 0.0
  %431 = vmatpush1.msra.mxu0 0.0
  %432 = vmatprep.subr.mxu0 0.0
  %433 = vmatpush1.msra.mxu0 0.0
  %434 = vmatprep.subr.mxu0 0.0
  %435 = vmatpush1.msra.mxu0 0.0
  %436 = vmatprep.subr.mxu0 0.0
  %437 = vmatpush1.msra.mxu0 0.0
  %438 = vmatprep.subr.mxu0 0.0
  %439 = vmatpush1.msra.mxu0 0.0
  %440 = vmatprep.mubr.f32.mxu0 0.0
  %441 = vmatmul.mubr.f32.gmra.mrb[0].mxu0 %v365
  %v442 = vpop.f32.mrb[0].mxu0
  %v443 = vadd.f32 %v346, %v442
  %v444 = vpop.f32.mrb[0].mxu0
  %445 = vmatprep.mubr.f32.mxu0 0.0
  %446 = vmatmul.mubr.f32.gmra.mrb[0].mxu0 %v368
  %v447 = vpop.f32.mrb[0].mxu0
  %v448 = vadd.f32 %v351, %v447
  %v449 = vpop.f32.mrb[0].mxu0
  %450 = vmatprep.mubr.f32.mxu0 0.0
  %451 = vmatmul.mubr.f32.gmra.mrb[0].mxu0 %v371
  %v452 = vpop.f32.mrb[0].mxu0
  %v453 = vadd.f32 %v356, %v452
  %v454 = vpop.f32.mrb[0].mxu0
  %455 = vmatprep.mubr.f32.mxu0 0.0
  %456 = vmatmul.mubr.f32.gmra.mrb[0].mxu0 %v374
  %v457 = vpop.f32.mrb[0].mxu0
  %v458 = vadd.f32 %v361, %v457
  %v459 = vpop.f32.mrb[0].mxu0
  %460 = vdwg.mxu0
  %v461 = vmul.f32 %v185, %v443
  %v462 = vmul.f32 %v190, %v448
  %v463 = vmul.f32 %v195, %v453
  %v464 = vmul.f32 %v200, %v458
  %vm465 = vcmp.gt.f32.partialorder %v461, 20.0
  %vm466 = vcmp.gt.f32.partialorder %v462, 20.0
  %vm467 = vcmp.gt.f32.partialorder %v463, 20.0
  %vm468 = vcmp.gt.f32.partialorder %v464, 20.0
  %v469 = vmul.f32 %v461, 1.442695
  %v470 = vpow.pop %v469
  %v471 = vmul.f32 %v462, 1.442695
  %v472 = vpow.pop %v471
  %v473 = vmul.f32 %v463, 1.442695
  %v474 = vpow.pop %v473
  %v475 = vmul.f32 %v464, 1.442695
  %v476 = vpow.pop %v475
  %v477 = vadd.f32 %v470, 1.0
  %v478 = vlog2.pop %v477
  %v479 = vmul.f32 %v478, 0.6931472
  %v480 = vmul.f32 -0.5, %v470
  %v481 = vadd.f32 %v480, 1.0
  %v482 = vmul.f32 %v481, %v470
  %v483 = vand.u32 2147483647, %v470
  %vm484 = vcmp.lt.f32.partialorder %v483, 0.0004427343
  %v485 = vsel %vm484, %v482, %v479
  %v486 = vadd.f32 %v472, 1.0
  %v487 = vlog2.pop %v486
  %v488 = vmul.f32 %v487, 0.6931472
  %v489 = vmul.f32 -0.5, %v472
  %v490 = vadd.f32 %v489, 1.0
  %v491 = vmul.f32 %v490, %v472
  %v492 = vand.u32 2147483647, %v472
  %vm493 = vcmp.lt.f32.partialorder %v492, 0.0004427343
  %v494 = vsel %vm493, %v491, %v488
  %v495 = vadd.f32 %v474, 1.0
  %v496 = vlog2.pop %v495
  %v497 = vmul.f32 %v496, 0.6931472
  %v498 = vmul.f32 -0.5, %v474
  %v499 = vadd.f32 %v498, 1.0
  %v500 = vmul.f32 %v499, %v474
  %v501 = vand.u32 2147483647, %v474
  %vm502 = vcmp.lt.f32.partialorder %v501, 0.0004427343
  %v503 = vsel %vm502, %v500, %v497
  %v504 = vadd.f32 %v476, 1.0
  %v505 = vlog2.pop %v504
  %v506 = vmul.f32 %v505, 0.6931472
  %v507 = vmul.f32 -0.5, %v476
  %v508 = vadd.f32 %v507, 1.0
  %v509 = vmul.f32 %v508, %v476
  %v510 = vand.u32 2147483647, %v476
  %vm511 = vcmp.lt.f32.partialorder %v510, 0.0004427343
  %v512 = vsel %vm511, %v509, %v506
  %v513 = vsel %vm465, %v461, %v485
  %v514 = vsel %vm466, %v462, %v494
  %v515 = vsel %vm467, %v463, %v503
  %v516 = vsel %vm468, %v464, %v512
  %518 = vset.pattern.permute.xlu0 0
  %519 = vperm.xlu0 %518, %v251
  %v520 = vpop.permute.xlu0 %519
  %523 = vset.pattern.permute.xlu0 0
  %524 = vperm.xlu0 %523, %v252
  %v525 = vpop.permute.xlu0 %524
  %528 = vset.pattern.permute.xlu0 0
  %529 = vperm.xlu0 %528, %v253
  %v530 = vpop.permute.xlu0 %529
  %533 = vset.pattern.permute.xlu0 0
  %534 = vperm.xlu0 %533, %v254
  %v535 = vpop.permute.xlu0 %534
  %v538 = vsel %vm363, %v259, 0
  %v541 = vsel %vm363, %v260, 0
  %v544 = vsel %vm363, %v261, 0
  %v547 = vsel %vm363, %v262, 0
  %549 = vmatprep.subr.mxu0 0.0
  %550 = vmatpush1.msra.mxu0 %v513
  %551 = vmatprep.subr.mxu0 0.0
  %552 = vmatpush1.msra.mxu0 %v514
  %553 = vmatprep.subr.mxu0 0.0
  %554 = vmatpush1.msra.mxu0 %v515
  %555 = vmatprep.subr.mxu0 0.0
  %556 = vmatpush1.msra.mxu0 %v516
  %557 = vmatprep.subr.mxu0 0.0
  %558 = vmatpush1.msra.mxu0 0.0
  %559 = vmatprep.subr.mxu0 0.0
  %560 = vmatpush1.msra.mxu0 0.0
  %561 = vmatprep.subr.mxu0 0.0
  %562 = vmatpush1.msra.mxu0 0.0
  %563 = vmatprep.subr.mxu0 0.0
  %564 = vmatpush1.msra.mxu0 0.0
  %565 = vmatprep.subr.mxu0 0.0
  %566 = vmatpush1.msra.mxu0 0.0
  %567 = vmatprep.subr.mxu0 0.0
  %568 = vmatpush1.msra.mxu0 0.0
  %569 = vmatprep.subr.mxu0 0.0
  %570 = vmatpush1.msra.mxu0 0.0
  %571 = vmatprep.subr.mxu0 0.0
  %572 = vmatpush1.msra.mxu0 0.0
  %573 = vmatprep.subr.mxu0 0.0
  %574 = vmatpush1.msra.mxu0 0.0
  %575 = vmatprep.subr.mxu0 0.0
  %576 = vmatpush1.msra.mxu0 0.0
  %577 = vmatprep.subr.mxu0 0.0
  %578 = vmatpush1.msra.mxu0 0.0
  %579 = vmatprep.subr.mxu0 0.0
  %580 = vmatpush1.msra.mxu0 0.0
  %581 = vmatprep.subr.mxu0 0.0
  %582 = vmatpush1.msra.mxu0 0.0
  %583 = vmatprep.subr.mxu0 0.0
  %584 = vmatpush1.msra.mxu0 0.0
  %585 = vmatprep.subr.mxu0 0.0
  %586 = vmatpush1.msra.mxu0 0.0
  %587 = vmatprep.subr.mxu0 0.0
  %588 = vmatpush1.msra.mxu0 0.0
  %589 = vmatprep.subr.mxu0 0.0
  %590 = vmatpush1.msra.mxu0 0.0
  %591 = vmatprep.subr.mxu0 0.0
  %592 = vmatpush1.msra.mxu0 0.0
  %593 = vmatprep.subr.mxu0 0.0
  %594 = vmatpush1.msra.mxu0 0.0
  %595 = vmatprep.subr.mxu0 0.0
  %596 = vmatpush1.msra.mxu0 0.0
  %597 = vmatprep.subr.mxu0 0.0
  %598 = vmatpush1.msra.mxu0 0.0
  %599 = vmatprep.subr.mxu0 0.0
  %600 = vmatpush1.msra.mxu0 0.0
  %601 = vmatprep.subr.mxu0 0.0
  %602 = vmatpush1.msra.mxu0 0.0
  %603 = vmatprep.subr.mxu0 0.0
  %604 = vmatpush1.msra.mxu0 0.0
  %605 = vmatprep.subr.mxu0 0.0
  %606 = vmatpush1.msra.mxu0 0.0
  %607 = vmatprep.subr.mxu0 0.0
  %608 = vmatpush1.msra.mxu0 0.0
  %609 = vmatprep.subr.mxu0 0.0
  %610 = vmatpush1.msra.mxu0 0.0
  %611 = vmatprep.subr.mxu0 0.0
  %612 = vmatpush1.msra.mxu0 0.0
  %613 = vmatprep.mubr.f32.mxu0 0.0
  %614 = vmatmul.mubr.f32.gmra.mrb[0].mxu0 %v538
  %v615 = vpop.f32.mrb[0].mxu0
  %v616 = vadd.f32 %v520, %v615
  %v617 = vpop.f32.mrb[0].mxu0
  %618 = vmatprep.mubr.f32.mxu0 0.0
  %619 = vmatmul.mubr.f32.gmra.mrb[0].mxu0 %v541
  %v620 = vpop.f32.mrb[0].mxu0
  %v621 = vadd.f32 %v525, %v620
  %v622 = vpop.f32.mrb[0].mxu0
  %623 = vmatprep.mubr.f32.mxu0 0.0
  %624 = vmatmul.mubr.f32.gmra.mrb[0].mxu0 %v544
  %v625 = vpop.f32.mrb[0].mxu0
  %v626 = vadd.f32 %v530, %v625
  %v627 = vpop.f32.mrb[0].mxu0
  %628 = vmatprep.mubr.f32.mxu0 0.0
  %629 = vmatmul.mubr.f32.gmra.mrb[0].mxu0 %v547
  %v630 = vpop.f32.mrb[0].mxu0
  %v631 = vadd.f32 %v535, %v630
  %v632 = vpop.f32.mrb[0].mxu0
  %633 = vdwg.mxu0
  %v634 = vmul.f32 %v205, %v616
  %v635 = vmul.f32 %v210, %v621
  %v636 = vmul.f32 %v215, %v626
  %v637 = vmul.f32 %v220, %v631
  %vm638 = vcmp.gt.f32.partialorder %v634, 20.0
  %vm639 = vcmp.gt.f32.partialorder %v635, 20.0
  %vm640 = vcmp.gt.f32.partialorder %v636, 20.0
  %vm641 = vcmp.gt.f32.partialorder %v637, 20.0
  %v642 = vmul.f32 %v634, 1.442695
  %v643 = vpow.pop %v642
  %v644 = vmul.f32 %v635, 1.442695
  %v645 = vpow.pop %v644
  %v646 = vmul.f32 %v636, 1.442695
  %v647 = vpow.pop %v646
  %v648 = vmul.f32 %v637, 1.442695
  %v649 = vpow.pop %v648
  %v650 = vadd.f32 %v643, 1.0
  %v651 = vlog2.pop %v650
  %v652 = vmul.f32 %v651, 0.6931472
  %v653 = vmul.f32 -0.5, %v643
  %v654 = vadd.f32 %v653, 1.0
  %v655 = vmul.f32 %v654, %v643
  %v656 = vand.u32 2147483647, %v643
  %vm657 = vcmp.lt.f32.partialorder %v656, 0.0004427343
  %v658 = vsel %vm657, %v655, %v652
  %v659 = vadd.f32 %v645, 1.0
  %v660 = vlog2.pop %v659
  %v661 = vmul.f32 %v660, 0.6931472
  %v662 = vmul.f32 -0.5, %v645
  %v663 = vadd.f32 %v662, 1.0
  %v664 = vmul.f32 %v663, %v645
  %v665 = vand.u32 2147483647, %v645
  %vm666 = vcmp.lt.f32.partialorder %v665, 0.0004427343
  %v667 = vsel %vm666, %v664, %v661
  %v668 = vadd.f32 %v647, 1.0
  %v669 = vlog2.pop %v668
  %v670 = vmul.f32 %v669, 0.6931472
  %v671 = vmul.f32 -0.5, %v647
  %v672 = vadd.f32 %v671, 1.0
  %v673 = vmul.f32 %v672, %v647
  %v674 = vand.u32 2147483647, %v647
  %vm675 = vcmp.lt.f32.partialorder %v674, 0.0004427343
  %v676 = vsel %vm675, %v673, %v670
  %v677 = vadd.f32 %v649, 1.0
  %v678 = vlog2.pop %v677
  %v679 = vmul.f32 %v678, 0.6931472
  %v680 = vmul.f32 -0.5, %v649
  %v681 = vadd.f32 %v680, 1.0
  %v682 = vmul.f32 %v681, %v649
  %v683 = vand.u32 2147483647, %v649
  %vm684 = vcmp.lt.f32.partialorder %v683, 0.0004427343
  %v685 = vsel %vm684, %v682, %v679
  %v686 = vsel %vm638, %v634, %v658
  %v687 = vsel %vm639, %v635, %v667
  %v688 = vsel %vm640, %v636, %v676
  %v689 = vsel %vm641, %v637, %v685
  %v690 = vld [vmem:[%s4] sm:$0xff]
  %v691 = vld [vmem:[%s4 + $0x8] sm:$0xff]
  %v692 = vld [vmem:[%s4 + $0x10] sm:$0xff]
  %v693 = vld [vmem:[%s4 + $0x18] sm:$0xff]
  %695 = vset.pattern.permute.xlu0 0
  %696 = vperm.xlu0 %695, %v690
  %v697 = vpop.permute.xlu0 %696
  %700 = vset.pattern.permute.xlu0 0
  %701 = vperm.xlu0 %700, %v691
  %v702 = vpop.permute.xlu0 %701
  %705 = vset.pattern.permute.xlu0 0
  %706 = vperm.xlu0 %705, %v692
  %v707 = vpop.permute.xlu0 %706
  %710 = vset.pattern.permute.xlu0 0
  %711 = vperm.xlu0 %710, %v693
  %v712 = vpop.permute.xlu0 %711
  %v714 = vmul.f32 %v686, %v697
  %v715 = vmul.f32 %v687, %v702
  %v716 = vmul.f32 %v688, %v707
  %v717 = vmul.f32 %v689, %v712
  %v718 = vadd.f32 %v714, %v715
  %v719 = vadd.f32 %v718, %v716
  %v720 = vadd.f32 %v719, %v717
  %v721 = vrot.slane %v720, 4
  %v722 = vadd.f32 %v720, %v721
  %v723 = vrot.slane %v722, 2
  %v724 = vadd.f32 %v722, %v723
  %v725 = vrot.slane %v724, 1
  %v726 = vadd.f32 %v724, %v725
  %v727 = vld [vmem:[#allocation2] sm:$0x1]
  %729 = vset.pattern.permute.xlu0 0
  %730 = vperm.xlu0 %729, %v727
  %v731 = vpop.permute.xlu0 %730
  %v733 = vlaneseq
  %v734 = vshrl.u32 %v733, 7
  %v735 = vsub.s32 0, %v734
  %v736 = vrot.slane %v731, %v735
  %v737 = vadd.f32 %v726, %v736
  %738 = vst [vmem:[%s6] sm:$0x1] %v737
  // Predicated region
  $region26: #{fnn_pallas.1} parent=0 // pred_check
    _
  $region27: #{fnn_pallas.1} parent=0 // pred_check_branch
    %740 = sbr.rel (0) target = $region29
  $region28: #{fnn_pallas.1} parent=0 // pred_region
    _
  $region29: #{fnn_pallas.1} parent=0 // pred_fallthru
    _
  // Predicated region
  $region30: #{fnn_pallas.1} parent=0 // pred_check
    _
  $region31: #{fnn_pallas.1} parent=0 // pred_check_branch
    %742 = sbr.rel (0) target = $region33
  $region32: #{fnn_pallas.1} parent=0 // pred_region
    _
  $region33: #{fnn_pallas.1} parent=0 // pred_fallthru
    _

</llo_original>
